<compile_context>
chip_gen: v7x
topology: tpu7x:2x2x1
jax: 0.10.0
libtpu: 0.0.40
codegen_flags: <defaults>
</compile_context>

<pallas_src>
import functools

import jax
import jax.numpy as jnp
from jax import lax
from jax.experimental import pallas as pl
from jax.experimental.pallas import tpu as pltpu


def _triplet_kernel(emb_ref, lab_col_ref, lab_row_ref, out_ref, *, margin, num_hard):
    """One mini-batch. emb_ref: (B,D); lab_col_ref: (B,1); lab_row_ref: (1,B)."""
    x = emb_ref[...]                       # (B, D) f32 or bf16
    lab_col = lab_col_ref[...]             # (B, 1) i32
    lab_row = lab_row_ref[...]             # (1, B) i32
    B = x.shape[0]

    # Gram matrix on the MXU, contracting the last dim of both operands
    # (x . x^T without materializing a transpose of x).
    gram = lax.dot_general(
        x, x,
        dimension_numbers=(((1,), (1,)), ((), ())),
        preferred_element_type=jnp.float32,
    )                                      # (B, B) f32

    row = lax.broadcasted_iota(jnp.int32, (B, B), 0)
    col = lax.broadcasted_iota(jnp.int32, (B, B), 1)
    eye = row == col

    # Squared norms from the Gram diagonal: no [B,D] reduction, no transpose.
    diag = jnp.where(eye, gram, 0.0)
    sq_col = jnp.sum(diag, axis=1, keepdims=True)    # (B, 1)  |x_i|^2
    sq_row = jnp.sum(diag, axis=0, keepdims=True)    # (1, B)  |x_j|^2

    d2 = sq_col + sq_row - 2.0 * gram
    dist = jnp.sqrt(jnp.maximum(d2, 0.0))            # (B, B) euclidean distances

    # Masks (labels come pre-shaped, so no in-kernel transpose).
    lab_eq = lab_col == lab_row                      # (B, B) bool
    pos_mask = lab_eq & jnp.logical_not(eye)
    neg_mask = jnp.logical_not(lab_eq)

    # Single reduction gives both pair counts.
    n_eq = jnp.sum(lab_eq.astype(jnp.int32))
    n_pos = n_eq - B
    n_neg = B * B - n_eq

    BIG = jnp.float32(3e38)
    pos_vals = jnp.where(pos_mask, dist, -BIG)       # maximize over these
    neg_vals = jnp.where(neg_mask, dist, BIG)        # minimize over these

    if num_hard == 1:
        # Fast path: single max / min reduction per side.
        hard_pos = jnp.max(pos_vals)
        hard_neg = jnp.min(neg_vals)
    else:
        k_pos = jnp.minimum(jnp.int32(num_hard), n_pos)
        k_neg = jnp.minimum(jnp.int32(num_hard), n_neg)

        # Duplicate-aware extraction: each step removes ALL copies of the
        # current extremum and credits min(count, remaining) of them.
        # 2 XLU reductions per step, no serialized index tie-break chain.
        pos_sum = jnp.float32(0.0)
        rem_p = k_pos
        vals = pos_vals
        for _ in range(num_hard):
            m = jnp.max(vals)
            c = jnp.sum((vals == m).astype(jnp.int32))
            take = jnp.minimum(c, rem_p)
            pos_sum = pos_sum + m * take.astype(jnp.float32)
            rem_p = rem_p - take
            vals = jnp.where(vals == m, -BIG, vals)

        neg_sum = jnp.float32(0.0)
        rem_n = k_neg
        vals = neg_vals
        for _ in range(num_hard):
            m = jnp.min(vals)
            c = jnp.sum((vals == m).astype(jnp.int32))
            take = jnp.minimum(c, rem_n)
            neg_sum = neg_sum + m * take.astype(jnp.float32)
            rem_n = rem_n - take
            vals = jnp.where(vals == m, BIG, vals)

        hard_pos = pos_sum / jnp.maximum(k_pos, 1).astype(jnp.float32)
        hard_neg = neg_sum / jnp.maximum(k_neg, 1).astype(jnp.float32)

    loss = jnp.maximum(hard_pos - hard_neg + jnp.float32(margin), 0.0)
    loss = jnp.where((n_pos == 0) | (n_neg == 0), jnp.float32(0.0), loss)
    out_ref[0, 0] = loss


def _prep_embeddings(embeddings):
    # f32 / bf16 are fed straight to the MXU (f32 accumulation); anything
    # else is up-cast once in the wrapper.
    if embeddings.dtype not in (jnp.float32, jnp.bfloat16):
        embeddings = embeddings.astype(jnp.float32)
    return embeddings


def online_triplet_loss(embeddings, labels, *, margin=1.0, num_hard=1):
    """embeddings: [B, D] f32/bf16; labels: [B] int -> scalar f32 loss."""
    B, _ = embeddings.shape
    embeddings = _prep_embeddings(embeddings)
    lab_col = labels.reshape(B, 1).astype(jnp.int32)
    lab_row = labels.reshape(1, B).astype(jnp.int32)
    kernel = functools.partial(_triplet_kernel, margin=margin, num_hard=num_hard)
    out = pl.pallas_call(
        kernel,
        out_shape=jax.ShapeDtypeStruct((1, 1), jnp.float32),
        in_specs=[
            pl.BlockSpec(memory_space=pltpu.MemorySpace.VMEM),
            pl.BlockSpec(memory_space=pltpu.MemorySpace.VMEM),
            pl.BlockSpec(memory_space=pltpu.MemorySpace.VMEM),
        ],
        # Scalar result through the scalar path: no masked (1,1) vector store.
        out_specs=pl.BlockSpec(memory_space=pltpu.MemorySpace.SMEM),
    )(embeddings, lab_col, lab_row)
    return out[0, 0]


def online_triplet_loss_batched(embeddings, labels, *, margin=1.0, num_hard=1):
    """Many independent mini-batches in one gridded call.

    embeddings: [G, B, D] f32/bf16; labels: [G, B] int -> [G] f32 losses.
    One grid step per group, marked "parallel" so the megacore / both v7x
    TensorCores can split the group axis; amortizes per-call overhead.
    """
    G, B, D = embeddings.shape
    embeddings = _prep_embeddings(embeddings)
    lab_col = labels.reshape(G, B, 1).astype(jnp.int32)
    lab_row = labels.reshape(G, 1, B).astype(jnp.int32)
    kernel = functools.partial(_triplet_kernel, margin=margin, num_hard=num_hard)
    out = pl.pallas_call(
        kernel,
        out_shape=jax.ShapeDtypeStruct((G, 1, 1), jnp.float32),
        grid=(G,),
        in_specs=[
            pl.BlockSpec((None, B, D), lambda g: (g, 0, 0)),
            pl.BlockSpec((None, B, 1), lambda g: (g, 0, 0)),
            pl.BlockSpec((None, 1, B), lambda g: (g, 0, 0)),
        ],
        out_specs=pl.BlockSpec((None, 1, 1), lambda g: (g, 0, 0)),
        compiler_params=pltpu.CompilerParams(
            dimension_semantics=("parallel",)),
    )(embeddings, lab_col, lab_row)
    return out[:, 0, 0]


def _reference(embeddings, labels, margin=1.0, num_hard=1):
    """Plain-JAX reference mirroring the PyTorch forward (eager only)."""
    B = embeddings.shape[0]
    e = embeddings.astype(jnp.float32)
    d2 = (
        jnp.sum(e**2, axis=1)[:, None]
        + jnp.sum(e**2, axis=1)[None, :]
        - 2.0 * e @ e.T
    )
    dist = jnp.sqrt(jnp.maximum(d2, 0.0))
    lab = labels[:, None]
    pos_mask = (lab == lab.T) & ~jnp.eye(B, dtype=bool)
    neg_mask = lab != lab.T
    pos_d = dist[pos_mask]
    neg_d = dist[neg_mask]
    k_pos = min(num_hard, int(pos_d.shape[0]))
    k_neg = min(num_hard, int(neg_d.shape[0]))
    if k_pos == 0 or k_neg == 0:
        return jnp.float32(0.0)
    hard_pos = jnp.mean(jnp.sort(pos_d)[::-1][:k_pos])
    hard_neg = jnp.mean(jnp.sort(neg_d)[:k_neg])
    return jnp.maximum(hard_pos - hard_neg + margin, 0.0)


if __name__ == "__main__":
    key = jax.random.PRNGKey(0)
    k1, k2, k3, k4 = jax.random.split(key, 4)
    B, D = 8, 32

    embeddings = jax.random.normal(k1, (B, D), dtype=jnp.float32)
    labels = jax.random.randint(k2, (B,), 0, 3, dtype=jnp.int32)

    # num_hard = 1 (default / fast path)
    loss1 = jax.block_until_ready(
        online_triplet_loss(embeddings, labels, margin=1.0, num_hard=1))
    ref1 = _reference(embeddings, labels, margin=1.0, num_hard=1)
    assert jnp.allclose(loss1, ref1, atol=1e-4, rtol=1e-4), (loss1, ref1)

    # num_hard = 2 (duplicate-aware top-k path)
    loss2 = jax.block_until_ready(
        online_triplet_loss(embeddings, labels, margin=1.0, num_hard=2))
    ref2 = _reference(embeddings, labels, margin=1.0, num_hard=2)
    assert jnp.allclose(loss2, ref2, atol=1e-4, rtol=1e-4), (loss2, ref2)

    # Batched (gridded) variant over several independent mini-batches.
    G = 3
    emb_g = jax.random.normal(k3, (G, B, D), dtype=jnp.float32)
    lab_g = jax.random.randint(k4, (G, B), 0, 3, dtype=jnp.int32)
    loss_g = jax.block_until_ready(
        online_triplet_loss_batched(emb_g, lab_g, margin=1.0, num_hard=1))
    ref_g = jnp.stack(
        [_reference(emb_g[g], lab_g[g], margin=1.0, num_hard=1) for g in range(G)])
    assert jnp.allclose(loss_g, ref_g, atol=1e-4, rtol=1e-4), (loss_g, ref_g)

    print("KERNEL_OK")
</pallas_src>

<mosaic_0001>
module attributes {stable_mosaic.version = 11 : i64} {
  func.func @_triplet_kernel(%arg0: memref<8x32xf32, #tpu.memory_space<vmem>>, %arg1: memref<8x1xi32, #tpu.memory_space<vmem>>, %arg2: memref<1x8xi32, #tpu.memory_space<vmem>>, %arg3: memref<1x1xf32, #tpu.memory_space<smem>>) attributes {dimension_semantics = [], scalar_prefetch = 0 : i64, scratch_operands = 0 : i64, tpu.core_type = #tpu.core_type<tc>} {
    %c0 = arith.constant 0 : index
    %c0_0 = arith.constant 0 : index
    %0 = vector.load %arg0[%c0, %c0_0] : memref<8x32xf32, #tpu.memory_space<vmem>>, vector<8x32xf32>
    %c0_1 = arith.constant 0 : index
    %c0_2 = arith.constant 0 : index
    %1 = vector.load %arg1[%c0_1, %c0_2] : memref<8x1xi32, #tpu.memory_space<vmem>>, vector<8x1xi32>
    %c0_3 = arith.constant 0 : index
    %c0_4 = arith.constant 0 : index
    %2 = vector.load %arg2[%c0_3, %c0_4] : memref<1x8xi32, #tpu.memory_space<vmem>>, vector<1x8xi32>
    %cst = arith.constant dense<0.000000e+00> : vector<8x8xf32>
    %3 = tpu.matmul %0, %0, %cst {dimension_numbers = #tpu.dot_dimension_numbers<[1], [1], [0], [0], [0, 0, 1, 0], [], []>} : vector<8x32xf32>, vector<8x32xf32>, vector<8x8xf32> -> vector<8x8xf32>
    %4 = tpu.iota {dimensions = array<i32: 0>} : vector<8x8xi32>
    %5 = tpu.iota {dimensions = array<i32: 1>} : vector<8x8xi32>
    %6 = arith.cmpi eq, %4, %5 : vector<8x8xi32>
    %cst_5 = arith.constant 0.000000e+00 : f32
    %7 = vector.broadcast %cst_5 : f32 to vector<8x8xf32>
    %8 = arith.select %6, %3, %7 : vector<8x8xi1>, vector<8x8xf32>
    %cst_6 = arith.constant dense<0.000000e+00> : vector<8xf32>
    %9 = vector.multi_reduction <add>, %8, %cst_6 [1] : vector<8x8xf32> to vector<8xf32>
    %10 = vector.shape_cast %9 : vector<8xf32> to vector<8x1xf32>
    %cst_7 = arith.constant dense<0.000000e+00> : vector<8xf32>
    %11 = vector.multi_reduction <add>, %8, %cst_7 [0] : vector<8x8xf32> to vector<8xf32>
    %12 = vector.shape_cast %11 : vector<8xf32> to vector<1x8xf32>
    %13 = vector.broadcast %10 : vector<8x1xf32> to vector<8x8xf32>
    %14 = vector.broadcast %12 : vector<1x8xf32> to vector<8x8xf32>
    %15 = arith.addf %13, %14 : vector<8x8xf32>
    %cst_8 = arith.constant 2.000000e+00 : f32
    %16 = vector.broadcast %cst_8 : f32 to vector<8x8xf32>
    %17 = arith.mulf %16, %3 : vector<8x8xf32>
    %18 = arith.subf %15, %17 : vector<8x8xf32>
    %cst_9 = arith.constant 0.000000e+00 : f32
    %19 = vector.broadcast %cst_9 : f32 to vector<8x8xf32>
    %20 = arith.maximumf %18, %19 : vector<8x8xf32>
    %21 = math.sqrt %20 : vector<8x8xf32>
    %22 = vector.broadcast %1 : vector<8x1xi32> to vector<8x8xi32>
    %23 = vector.broadcast %2 : vector<1x8xi32> to vector<8x8xi32>
    %24 = arith.cmpi eq, %22, %23 : vector<8x8xi32>
    %cst_10 = arith.constant dense<true> : vector<8x8xi1>
    %25 = arith.xori %6, %cst_10 : vector<8x8xi1>
    %26 = arith.andi %24, %25 : vector<8x8xi1>
    %cst_11 = arith.constant dense<true> : vector<8x8xi1>
    %27 = arith.xori %24, %cst_11 : vector<8x8xi1>
    %28 = arith.extui %24 : vector<8x8xi1> to vector<8x8xi32>
    %29 = vector.shape_cast %28 : vector<8x8xi32> to vector<1x8x8xi32>
    %cst_12 = arith.constant dense<0> : vector<1xi32>
    %30 = vector.multi_reduction <add>, %29, %cst_12 [1, 2] : vector<1x8x8xi32> to vector<1xi32>
    %31 = vector.shape_cast %30 : vector<1xi32> to vector<1x1x1xi32>
    %32 = vector.extract %31[0, 0, 0] : i32 from vector<1x1x1xi32>
    %c8_i32 = arith.constant 8 : i32
    %33 = arith.subi %32, %c8_i32 : i32
    %c64_i32 = arith.constant 64 : i32
    %34 = arith.subi %c64_i32, %32 : i32
    %cst_13 = arith.constant 0.000000e+00 : f32
    %cst_14 = arith.constant 3.000000e+38 : f32
    %35 = arith.subf %cst_13, %cst_14 : f32
    %36 = vector.broadcast %35 : f32 to vector<8x8xf32>
    %37 = arith.select %26, %21, %36 : vector<8x8xi1>, vector<8x8xf32>
    %cst_15 = arith.constant 3.000000e+38 : f32
    %38 = vector.broadcast %cst_15 : f32 to vector<8x8xf32>
    %39 = arith.select %27, %21, %38 : vector<8x8xi1>, vector<8x8xf32>
    %40 = vector.shape_cast %37 : vector<8x8xf32> to vector<1x8x8xf32>
    %cst_16 = arith.constant dense<0xFF800000> : vector<1xf32>
    %41 = vector.multi_reduction <maximumf>, %40, %cst_16 [1, 2] : vector<1x8x8xf32> to vector<1xf32>
    %42 = vector.shape_cast %41 : vector<1xf32> to vector<1x1x1xf32>
    %43 = vector.extract %42[0, 0, 0] : f32 from vector<1x1x1xf32>
    %44 = vector.shape_cast %39 : vector<8x8xf32> to vector<1x8x8xf32>
    %cst_17 = arith.constant dense<0x7F800000> : vector<1xf32>
    %45 = vector.multi_reduction <minimumf>, %44, %cst_17 [1, 2] : vector<1x8x8xf32> to vector<1xf32>
    %46 = vector.shape_cast %45 : vector<1xf32> to vector<1x1x1xf32>
    %47 = vector.extract %46[0, 0, 0] : f32 from vector<1x1x1xf32>
    %48 = arith.subf %43, %47 : f32
    %cst_18 = arith.constant 1.000000e+00 : f32
    %49 = arith.addf %48, %cst_18 : f32
    %cst_19 = arith.constant 0.000000e+00 : f32
    %50 = arith.maximumf %49, %cst_19 : f32
    %c0_i32 = arith.constant 0 : i32
    %51 = arith.cmpi eq, %33, %c0_i32 : i32
    %c0_i32_20 = arith.constant 0 : i32
    %52 = arith.cmpi eq, %34, %c0_i32_20 : i32
    %53 = arith.ori %51, %52 : i1
    %cst_21 = arith.constant 0.000000e+00 : f32
    %54 = arith.select %53, %cst_21, %50 : f32
    %c0_22 = arith.constant 0 : index
    %c0_23 = arith.constant 0 : index
    %55 = memref.load %arg3[%c0_22, %c0_23] : memref<1x1xf32, #tpu.memory_space<smem>>
    memref.store %54, %arg3[%c0_22, %c0_23] : memref<1x1xf32, #tpu.memory_space<smem>>
    return
  }
}

</mosaic_0001>

<llo_original>
// kernel: tpu_custom_call.1
$region0: #{tpu_custom_call.1}
  #allocation0 [shape = 'u32[]', space=smem, size = 0x4, offset = 0x4, fixed_abs, tag = 'smem constant byte address 0x4 - core index']
  #allocation1 [shape = 'u32[144,128]{1,0:T(1,128)}', space=vmem, size = 0x12000, scoped, tag = 'internal scratch']
  %s0 = inlined_call_operand.vmem [shape: f32[8,32], index: 0, kind: input, shape index: {}]
  %s1 = inlined_call_operand.vmem [shape: s32[8,1], index: 1, kind: input, shape index: {}]
  %s2 = inlined_call_operand.vmem [shape: s32[1,8], index: 2, kind: input, shape index: {}]
  %s3 = inlined_call_operand.hbm [shape: f32[1,1], index: 3, kind: output, shape index: {}]
  %s4 = sld [smem:[#allocation0]]
  $region22: #{tpu_custom_call.1} parent=0
    _
  %s6 = ssub.s32 1, %s4
  %s7 = scalar_select 0, %s6, %s4
  $region1: #{tpu_custom_call.1} parent=0
    #allocation2 [shape = 'u8[512]{0}', space=smem, size = 0x200, scoped, tag = 'output window, operand 0, single buffered']
    #allocation3 [shape = 's32[1]{0}', space=sflag, size = 0x4, scoped, tag = 'scoped memory for tpu_custom_call.1']
    %8 = vsyncpa [#allocation3], 0
    // Predicated region
    $region2: #{tpu_custom_call.1} parent=1 // pred_check
      _
    $region3: #{tpu_custom_call.1} parent=1 // pred_check_branch
      %10 = sbr.rel (0) target = $region5
    $region4: #{tpu_custom_call.1} parent=1 // pred_region
      _
    $region5: #{tpu_custom_call.1} parent=1 // pred_fallthru
      _
    // Predicated region
    $region6: #{tpu_custom_call.1} parent=1 // pred_check
      _
    $region7: #{tpu_custom_call.1} parent=1 // pred_check_branch
      %12 = sbr.rel (0) target = $region9
    $region8: #{tpu_custom_call.1} parent=1 // pred_region
      _
    $region9: #{tpu_custom_call.1} parent=1 // pred_fallthru
      _
    // Predicated region
    $region10: #{tpu_custom_call.1} parent=1 // pred_check
      _
    $region11: #{tpu_custom_call.1} parent=1 // pred_check_branch
      %14 = sbr.rel (0) target = $region13
    $region12: #{tpu_custom_call.1} parent=1 // pred_region
      _
    $region13: #{tpu_custom_call.1} parent=1 // pred_fallthru
      _
    %v15 = vld [vmem:[%s0] sm:$0xff]
    %v16 = vld [vmem:[%s1] sm:$0xff]
    %v17 = vld [vmem:[%s2] sm:$0x1]
    %vm18 = vcmask 261120
    %v20 = vsel %vm18, %v15, 0
    %22 = vmatprep.subr.mxu0 0.0
    %23 = vmatpush1.xpose.msra.mxu0 %v20
    %24 = vmatprep.subr.mxu0 0.0
    %25 = vmatpush1.xpose.msra.mxu0 0.0
    %26 = vmatprep.subr.mxu0 0.0
    %27 = vmatpush1.xpose.msra.mxu0 0.0
    %28 = vmatprep.subr.mxu0 0.0
    %29 = vmatpush1.xpose.msra.mxu0 0.0
    %30 = vmatprep.subr.mxu0 0.0
    %31 = vmatpush1.xpose.msra.mxu0 0.0
    %32 = vmatprep.subr.mxu0 0.0
    %33 = vmatpush1.xpose.msra.mxu0 0.0
    %34 = vmatprep.subr.mxu0 0.0
    %35 = vmatpush1.xpose.msra.mxu0 0.0
    %36 = vmatprep.subr.mxu0 0.0
    %37 = vmatpush1.xpose.msra.mxu0 0.0
    %38 = vmatprep.subr.mxu0 0.0
    %39 = vmatpush1.xpose.msra.mxu0 0.0
    %40 = vmatprep.subr.mxu0 0.0
    %41 = vmatpush1.xpose.msra.mxu0 0.0
    %42 = vmatprep.subr.mxu0 0.0
    %43 = vmatpush1.xpose.msra.mxu0 0.0
    %44 = vmatprep.subr.mxu0 0.0
    %45 = vmatpush1.xpose.msra.mxu0 0.0
    %46 = vmatprep.subr.mxu0 0.0
    %47 = vmatpush1.xpose.msra.mxu0 0.0
    %48 = vmatprep.subr.mxu0 0.0
    %49 = vmatpush1.xpose.msra.mxu0 0.0
    %50 = vmatprep.subr.mxu0 0.0
    %51 = vmatpush1.xpose.msra.mxu0 0.0
    %52 = vmatprep.subr.mxu0 0.0
    %53 = vmatpush1.xpose.msra.mxu0 0.0
    %54 = vmatprep.subr.mxu0 0.0
    %55 = vmatpush1.xpose.msra.mxu0 0.0
    %56 = vmatprep.subr.mxu0 0.0
    %57 = vmatpush1.xpose.msra.mxu0 0.0
    %58 = vmatprep.subr.mxu0 0.0
    %59 = vmatpush1.xpose.msra.mxu0 0.0
    %60 = vmatprep.subr.mxu0 0.0
    %61 = vmatpush1.xpose.msra.mxu0 0.0
    %62 = vmatprep.subr.mxu0 0.0
    %63 = vmatpush1.xpose.msra.mxu0 0.0
    %64 = vmatprep.subr.mxu0 0.0
    %65 = vmatpush1.xpose.msra.mxu0 0.0
    %66 = vmatprep.subr.mxu0 0.0
    %67 = vmatpush1.xpose.msra.mxu0 0.0
    %68 = vmatprep.subr.mxu0 0.0
    %69 = vmatpush1.xpose.msra.mxu0 0.0
    %70 = vmatprep.subr.mxu0 0.0
    %71 = vmatpush1.xpose.msra.mxu0 0.0
    %72 = vmatprep.subr.mxu0 0.0
    %73 = vmatpush1.xpose.msra.mxu0 0.0
    %74 = vmatprep.subr.mxu0 0.0
    %75 = vmatpush1.xpose.msra.mxu0 0.0
    %76 = vmatprep.subr.mxu0 0.0
    %77 = vmatpush1.xpose.msra.mxu0 0.0
    %78 = vmatprep.subr.mxu0 0.0
    %79 = vmatpush1.xpose.msra.mxu0 0.0
    %80 = vmatprep.subr.mxu0 0.0
    %81 = vmatpush1.xpose.msra.mxu0 0.0
    %82 = vmatprep.subr.mxu0 0.0
    %83 = vmatpush1.xpose.msra.mxu0 0.0
    %84 = vmatprep.subr.mxu0 0.0
    %85 = vmatpush1.xpose.msra.mxu0 0.0
    %86 = vmatprep.mubr.f32.mxu0 0.0
    %87 = vmatmul.mubr.f32.gmra.mrb[0].mxu0 %v20
    %v88 = vpop.f32.mrb[0].mxu0
    %v89 = vadd.f32 0.0, %v88
    %v90 = vpop.f32.mrb[0].mxu0
    %91 = vdwg.mxu0
    %v92 = vlaneseq
    %v93 = vshrl.u32 %v92, 7
    %v94 = vlaneseq
    %v95 = vand.u32 %v94, 127
    %vm96 = vcmp.eq.s32.totalorder %v93, %v95
    %v97 = vsel %vm96, %v89, 0.0
    %vm98 = vcmask 64512
    %v99 = vsel %vm98, %v97, 0.0
    %100 = vadd.xlane.f32.xlu0 %v99
    %v101 = vpop.xlane.xlu0 %100
    %v102 = vrot.slane %v99, 4
    %v103 = vadd.f32 %v99, %v102
    %v104 = vrot.slane %v103, 2
    %v105 = vadd.f32 %v103, %v104
    %v106 = vrot.slane %v105, 1
    %v107 = vadd.f32 %v105, %v106
    %v108 = vadd.f32 %v101, %v107
    %v109 = vmul.f32 %v89, 2.0
    %v110 = vsub.f32 %v108, %v109
    %v111 = vmax.f32 %v110, 0.0
    %v112 = vrsqrt.pop %v111
    %v113 = vmul.f32 %v111, %v112
    %vm114 = vcmp.eq.f32.partialorder %v111, inf
    %v115 = vsel %vm114, %v111, %v113
    %vm116 = vcmp.eq.f32.partialorder %v111, 0.0
    %v117 = vand.u32 %v111, 2147483648
    %v118 = vsel %vm116, %v117, %v115
    %119 = vset.pattern.permute.xlu0 0
    %120 = vperm.xlu0 %119, %v16
    %v121 = vpop.permute.xlu0 %120
    %v122 = vlaneseq
    %v123 = vshrl.u32 %v122, 7
    %v124 = vsub.s32 0, %v123
    %v125 = vrot.slane %v17, %v124
    %vm126 = vcmp.eq.s32.totalorder %v121, %v125
    %vm127 = vmxor %vm96, 1
    %vm128 = vmand %vm126, %vm127
    %vm129 = vmxor %vm126, 1
    %v130 = vsel %vm126, 1, 0
    %v131 = vsel %vm98, %v130, 0
    %v132 = vand.u32 %v131, 65535
    %v133 = vshrl.u32 %v131, 16
    %v134 = vcvt.s32.f32 %v132
    %v135 = vcvt.s32.f32 %v133
    %136 = vadd.xlane.f32.xlu0 %v134
    %v137 = vpop.xlane.xlu0 %136
    %138 = vadd.xlane.f32.xlu0 %v135
    %v139 = vpop.xlane.xlu0 %138
    %v140 = vcvt.f32.s32 %v137
    %v141 = vcvt.f32.s32 %v139
    %v142 = vshll.u32 %v141, 16
    %v143 = vadd.s32 %v142, %v140
    %v144 = vrot.slane %v143, 4
    %v145 = vadd.s32 %v143, %v144
    %v146 = vrot.slane %v145, 2
    %v147 = vadd.s32 %v145, %v146
    %v148 = vrot.slane %v147, 1
    %v149 = vadd.s32 %v147, %v148
    %s150 = vtos %v149
    %s151 = ssub.s32 %s150, 8
    %s152 = ssub.s32 64, %s150
    %v153 = vsel %vm128, %v118, -3e+38
    %v154 = vsel %vm129, %v118, 3e+38
    %v155 = vsel %vm98, %v153, -inf
    %156 = vmax.xlane.f32.xlu0 %v155
    %v157 = vpop.xlane.xlu0 %156
    %v158 = vrot.slane %v157, 4
    %v159 = vmax.f32 %v157, %v158
    %v160 = vrot.slane %v159, 2
    %v161 = vmax.f32 %v159, %v160
    %v162 = vrot.slane %v161, 1
    %v163 = vmax.f32 %v161, %v162
    %s164 = vtos %v163
    %v165 = vsel %vm98, %v154, inf
    %166 = vmin.xlane.f32.xlu0 %v165
    %v167 = vpop.xlane.xlu0 %166
    %v168 = vrot.slane %v167, 4
    %v169 = vmin.f32 %v167, %v168
    %v170 = vrot.slane %v169, 2
    %v171 = vmin.f32 %v169, %v170
    %v172 = vrot.slane %v171, 1
    %v173 = vmin.f32 %v171, %v172
    %s174 = vtos %v173
    %s175 = ssub.f32 %s164, %s174
    %s176 = sadd.f32 %s175, 1.0
    %s177 = smax.f32 %s176, 0.0
    %p178 = scmp.eq.s32.totalorder %s151, 0
    %p179 = scmp.eq.s32.totalorder %s152, 0
    %p180 = por %p178, %p179
    %s181 = scalar_select %p180, 0.0, %s177
    %s182 = scalar_lea.smem [#allocation2], 0
    %183 = sst [smem:[%s182]] %s181
    // Predicated region
    $region14: #{tpu_custom_call.1} parent=1 // pred_check
      _
    $region15: #{tpu_custom_call.1} parent=1 // pred_check_branch
      %185 = sbr.rel (0) target = $region17
    $region16: #{tpu_custom_call.1} parent=1 // pred_region
      %s187 = ssub.s32 16, 16
      %188 = vsyncadd [#allocation3], %s187
      %191 = dma.smem_to_hbm [#allocation2], 16, %s3, [#allocation3]
    $region17: #{tpu_custom_call.1} parent=1 // pred_fallthru
      _
    // Predicated region
    $region18: #{tpu_custom_call.1} parent=1 // pred_check
      _
    $region19: #{tpu_custom_call.1} parent=1 // pred_check_branch
      %193 = sbr.rel (0) target = $region21
    $region20: #{tpu_custom_call.1} parent=1 // pred_region
      %194 = dma.done [#allocation3], 16
    $region21: #{tpu_custom_call.1} parent=1 // pred_fallthru
      _
    %195 = sfence
    %196 = vsyncpa [#allocation3], 1

</llo_original>
